<compile_context>
chip_gen: v6e
topology: v6e:2x2x1
jax: 0.10.0
libtpu: 0.0.40
codegen_flags: <defaults>
</compile_context>

<pallas_src>
import functools

import jax
import jax.numpy as jnp
from jax.experimental import pallas as pl
from jax.experimental.pallas import tpu as pltpu

_LANE = 128      # lane width
_SUBLANE = 8     # f32 sublane count (bf16 packs 16 rows per vreg)


def _round_up(x, m):
    return ((x + m - 1) // m) * m


@functools.lru_cache(maxsize=1)
def _tpu_specs():
    """Returns (physical VMEM bytes per TensorCore, TensorCores per chip)."""
    kind = ""
    try:
        kind = jax.devices()[0].device_kind.lower()
    except Exception:
        pass
    is_v7 = "v7" in kind
    vmem_phys = (64 << 20) if is_v7 else (128 << 20)
    try:
        vmem_phys = int(pltpu.get_tpu_info().vmem_capacity_bytes)
    except Exception:
        pass
    num_tc = 2 if is_v7 else 1
    return vmem_phys, num_tc


def _threshold_penalty_kernel(logits_ref, thr_ref, out_ref):
    # Per-class logit shift fused into the kernel: shift = log(t / (1 - t)).
    # Computed in f32 (numerically safer for bf16 inputs, identical for f32),
    # then cast to the output dtype and broadcast over the batch rows.
    t = thr_ref[...].astype(jnp.float32)
    shift = jnp.log(t / (1.0 - t))
    out_ref[...] = logits_ref[...] + shift.astype(out_ref.dtype)


def _pick_tiles(B, C, itemsize):
    """Pick (batch_tile, class_tile) sized by a generation-aware VMEM budget."""
    vmem_phys, num_tc = _tpu_specs()
    # Working budget for the double-buffered in+out tiles (headroom for the rest).
    budget = min(48 << 20, max(16 << 20, vmem_phys // 2 - (8 << 20)))
    row_mult = 16 if itemsize <= 2 else _SUBLANE

    # Class tile: keep the FULL class dim whenever a minimal-row tile fits the
    # budget (full-dim block => no (8,128) constraint, no pad/slice round trip).
    if 4 * row_mult * C * itemsize <= budget:
        tc = C
    else:
        tc = max(_LANE, (budget // (4 * row_mult * itemsize)) // _LANE * _LANE)
        tc = min(tc, _round_up(C, _LANE))

    # Batch tile: fattest that fits the budget; capped by bytes, not row count.
    b_full = _round_up(B, row_mult)
    tb = budget // (4 * tc * itemsize)
    tb = max(row_mult, min((tb // row_mult) * row_mult, b_full))

    # Multi-TensorCore chips (v7x): aim for >= 2 grid steps per core with an
    # even total so both cores get balanced, pipelinable work. Skipped on the
    # single-TC v5e/v6e where a forced split only adds per-step overhead.
    n_c = pl.cdiv(C, tc)
    if num_tc > 1 and n_c == 1:
        max_steps = b_full // row_mult
        n_b = pl.cdiv(B, tb)
        if n_b < 2 * num_tc and max_steps >= 2:
            want = min(2 * num_tc, max_steps)
            if want % 2 == 1 and want + 1 <= max_steps:
                want += 1
            tb = max(row_mult, _round_up(pl.cdiv(b_full, want), row_mult))

    return tb, tc


def _vmem_limit_bytes(tb, tc, itemsize):
    vmem_phys, _ = _tpu_specs()
    # in + out tiles double-buffered, plus the (tiny) double-buffered thr row.
    need = 4 * tb * tc * itemsize + 2 * tc * itemsize + (2 << 20)
    ceiling = min(vmem_phys - (8 << 20), 100 << 20)   # ~56 MiB on v7x, 100 MiB on v5e/v6e
    return int(min(max(need, 16 << 20), ceiling))


def threshold_penalty(logits, threshold_per_class, *, needs_init=False,
                      threshold_multiplier=1.0):
    """JAX/Pallas equivalent of thresholdPenalty.forward.

    logits:              [B, C] float array
    threshold_per_class: [C] per-class thresholds in (0, 1) (fp64 in torch;
                         cast to logits dtype, matching `.to(logits)`)
    needs_init:          thresholdCalculator.needs_init flag
    """
    if needs_init:
        # torch: shift = threshold_multiplier * 0 -> logits + 0. Identity; skip
        # the full [B, C] HBM read+write entirely.
        return logits

    B, C = logits.shape
    dtype = logits.dtype
    itemsize = jnp.dtype(dtype).itemsize

    # Matches torch.special.logit(thresholdPerClass.detach().to(logits)):
    # cast thresholds to the logits dtype here; the logit itself is computed
    # inside the kernel. NOTE: threshold_multiplier is only used on the
    # needs_init path (multiplier * 0) in the PyTorch module, so it is
    # intentionally unused here.
    thr_row = threshold_per_class.astype(dtype).reshape(1, C)

    tb, tc = _pick_tiles(B, C, itemsize)
    grid = (pl.cdiv(B, tb), pl.cdiv(C, tc))   # ragged tiles are masked by BlockSpec

    return pl.pallas_call(
        _threshold_penalty_kernel,
        out_shape=jax.ShapeDtypeStruct((B, C), dtype),
        grid_spec=pl.GridSpec(
            grid=grid,
            in_specs=[
                pl.BlockSpec((tb, tc), lambda i, j: (i, j)),   # logits tile
                pl.BlockSpec((1, tc), lambda i, j: (0, j)),    # per-class thresholds
            ],
            out_specs=pl.BlockSpec((tb, tc), lambda i, j: (i, j)),
        ),
        compiler_params=pltpu.CompilerParams(
            dimension_semantics=("parallel", "parallel"),
            vmem_limit_bytes=_vmem_limit_bytes(tb, tc, itemsize)),
        cost_estimate=pl.CostEstimate(
            flops=B * C,
            transcendentals=grid[0] * C,
            bytes_accessed=2 * B * C * itemsize + C * itemsize),
    )(logits, thr_row)


# TODO(synk): getDecisionBoundaryWorking's threshold SGD update (autograd through
# stepAtThreshold + PU_F_Metric) is training-time state maintenance, not part of
# thresholdPenalty.forward, and is not ported here.


if __name__ == "__main__":
    key = jax.random.PRNGKey(0)
    k_l1, k_t1, k_l2, k_t2, k_l3, k_t3 = jax.random.split(key, 6)

    # ---- Case 1: small, lane-aligned class count ----
    B, C = 8, 256
    logits = jax.random.normal(k_l1, (B, C), dtype=jnp.float32)
    # Per-class thresholds within [threshold_min, threshold_max] as
    # getDecisionBoundaryWorking clamps them (initial_threshold=0.5 +/- jitter).
    thr = jnp.clip(
        0.5 + 0.25 * jax.random.uniform(k_t1, (C,), minval=-1.0, maxval=1.0),
        0.2, 0.8).astype(jnp.float32)
    out = jax.block_until_ready(
        threshold_penalty(logits, thr, needs_init=False, threshold_multiplier=1.0))
    ref = logits + jnp.log(thr / (1.0 - thr))[None, :]
    assert out.shape == (B, C) and out.dtype == logits.dtype
    assert jnp.allclose(out, ref, atol=1e-5, rtol=1e-5)

    # ---- Case 2: ragged batch + non-multiple-of-128 classes (full-C block,
    #              masked partial-lane stores, no pad/slice round trips) ----
    B2, C2 = 12, 20
    logits2 = jax.random.normal(k_l2, (B2, C2), dtype=jnp.float32)
    thr2 = jnp.clip(
        0.5 + 0.25 * jax.random.uniform(k_t2, (C2,), minval=-1.0, maxval=1.0),
        0.2, 0.8).astype(jnp.float32)
    out2 = jax.block_until_ready(threshold_penalty(logits2, thr2, needs_init=False))
    ref2 = logits2 + jnp.log(thr2 / (1.0 - thr2))[None, :]
    assert out2.shape == (B2, C2)
    assert jnp.allclose(out2, ref2, atol=1e-5, rtol=1e-5)

    # ---- Case 3: module-default class count (num_classes=1588, not 128-aligned) ----
    B3, C3 = 16, 1588
    logits3 = jax.random.normal(k_l3, (B3, C3), dtype=jnp.float32)
    thr3 = jnp.clip(
        0.5 + 0.25 * jax.random.uniform(k_t3, (C3,), minval=-1.0, maxval=1.0),
        0.2, 0.8).astype(jnp.float32)
    out3 = jax.block_until_ready(threshold_penalty(logits3, thr3, needs_init=False))
    ref3 = logits3 + jnp.log(thr3 / (1.0 - thr3))[None, :]
    assert out3.shape == (B3, C3)
    assert jnp.allclose(out3, ref3, atol=1e-5, rtol=1e-5)

    # ---- Case 4: needs_init path -> shift = multiplier * 0 -> identity ----
    out_init = jax.block_until_ready(
        threshold_penalty(logits, thr, needs_init=True, threshold_multiplier=3.0))
    assert jnp.allclose(out_init, logits)

    print("KERNEL_OK")
</pallas_src>

<mosaic_0001>
module attributes {stable_mosaic.version = 11 : i64} {
  func.func @_threshold_penalty_kernel(%arg0: i32, %arg1: i32, %arg2: memref<8x256xf32, #tpu.memory_space<vmem>>, %arg3: memref<1x256xf32, #tpu.memory_space<vmem>>, %arg4: memref<8x256xf32, #tpu.memory_space<vmem>>) attributes {dimension_semantics = [#tpu.dimension_semantics<parallel>, #tpu.dimension_semantics<parallel>], iteration_bounds = array<i64: 1, 1>, scalar_prefetch = 0 : i64, scratch_operands = 0 : i64, tpu.core_type = #tpu.core_type<tc>, window_params = [{transform_indices = @transform_0, window_bounds = array<i64: 8, 256>}, {transform_indices = @transform_1, window_bounds = array<i64: 1, 256>}, {transform_indices = @transform_2, window_bounds = array<i64: 8, 256>}]} {
    %c0 = arith.constant 0 : index
    %c0_0 = arith.constant 0 : index
    %0 = vector.load %arg3[%c0, %c0_0] : memref<1x256xf32, #tpu.memory_space<vmem>>, vector<1x256xf32>
    %cst = arith.constant 1.000000e+00 : f32
    %1 = vector.broadcast %cst : f32 to vector<1x256xf32>
    %2 = arith.subf %1, %0 : vector<1x256xf32>
    %3 = arith.divf %0, %2 : vector<1x256xf32>
    %4 = math.log %3 : vector<1x256xf32>
    %c0_1 = arith.constant 0 : index
    %c0_2 = arith.constant 0 : index
    %5 = vector.load %arg2[%c0_1, %c0_2] : memref<8x256xf32, #tpu.memory_space<vmem>>, vector<8x256xf32>
    %6 = vector.broadcast %4 : vector<1x256xf32> to vector<8x256xf32>
    %7 = arith.addf %5, %6 : vector<8x256xf32>
    %c0_3 = arith.constant 0 : index
    %c0_4 = arith.constant 0 : index
    %8 = vector.load %arg4[%c0_3, %c0_4] : memref<8x256xf32, #tpu.memory_space<vmem>>, vector<8x256xf32>
    tpu.vector_store %arg4[%c0_3, %c0_4], %7 {strides = array<i32>} : memref<8x256xf32, #tpu.memory_space<vmem>>, vector<8x256xf32>,
    return
  }
  func.func @transform_0(%arg0: i32, %arg1: i32) -> (i32, i32) {
    %c0_i32 = arith.constant 0 : i32
    return %arg0, %arg1 : i32, i32
  }
  func.func @transform_1(%arg0: i32, %arg1: i32) -> (i32, i32) {
    %c0_i32 = arith.constant 0 : i32
    %c0_i32_0 = arith.constant 0 : i32
    return %c0_i32, %arg1 : i32, i32
  }
  func.func @transform_2(%arg0: i32, %arg1: i32) -> (i32, i32) {
    %c0_i32 = arith.constant 0 : i32
    return %arg0, %arg1 : i32, i32
  }
}

</mosaic_0001>

<llo_original>
// kernel: tpu_custom_call.1
$region0: #{tpu_custom_call.1}
  #allocation0 [shape = 'u32[]', space=smem, size = 0x4, offset = 0x4, fixed_abs, tag = 'smem constant byte address 0x4 - core index']
  #allocation1 [shape = 'u32[144,128]{1,0:T(1,128)}', space=vmem, size = 0x12000, scoped, tag = 'internal scratch']
  %s0 = inlined_call_operand.hbm [shape: f32[8,256], index: 0, kind: input, shape index: {}]
  %s1 = inlined_call_operand.hbm [shape: f32[1,256], index: 1, kind: input, shape index: {}]
  %s2 = inlined_call_operand.hbm [shape: f32[8,256], index: 2, kind: output, shape index: {}]
  %s3 = sld [smem:[#allocation0]]
  $region26: #{tpu_custom_call.1} parent=0
    _
  %s5 = ssub.s32 1, %s3
  %s6 = scalar_select 0, %s5, %s3
  $region1: #{tpu_custom_call.1} parent=0
    #allocation2 [shape = 'u8[8192]{0}', space=vmem, size = 0x2000, scoped, tag = 'input window, operand 0, single buffered']
    #allocation3 [shape = 's32[1]{0}', space=sflag, size = 0x4, scoped, tag = 'scoped memory for tpu_custom_call.1']
    #allocation4 [shape = 's32[1]{0}', space=sflag, size = 0x4, scoped, tag = 'scoped memory for tpu_custom_call.1']
    #allocation5 [shape = 'u8[1024]{0}', space=vmem, size = 0x400, scoped, tag = 'input window, operand 1, single buffered']
    #allocation6 [shape = 's32[1]{0}', space=sflag, size = 0x4, scoped, tag = 'scoped memory for tpu_custom_call.1']
    #allocation7 [shape = 'u8[8192]{0}', space=vmem, size = 0x2000, scoped, tag = 'output window, operand 0, single buffered']
    %7 = vsyncpa [#allocation3], 0
    %8 = vsyncpa [#allocation6], 0
    %9 = vsyncpa [#allocation4], 0
    // Predicated region
    $region2: #{tpu_custom_call.1} parent=1 // pred_check
      _
    $region3: #{tpu_custom_call.1} parent=1 // pred_check_branch
      %11 = sbr.rel (0) target = $region5
    $region4: #{tpu_custom_call.1} parent=1 // pred_region
      %s13 = ssub.s32 256, 256
      %14 = vsyncadd [#allocation3], %s13
      %s16 = sshll.u32 [#allocation2], 4
      %s17 = int_to_ptr.vmem [resolvable:$true] %s16
      %19 = dma.hbm_to_vmem [thread:$0]  %s0, 256, %s17, [#allocation3]
    $region5: #{tpu_custom_call.1} parent=1 // pred_fallthru
      _
    // Predicated region
    $region6: #{tpu_custom_call.1} parent=1 // pred_check
      _
    $region7: #{tpu_custom_call.1} parent=1 // pred_check_branch
      %21 = sbr.rel (0) target = $region9
    $region8: #{tpu_custom_call.1} parent=1 // pred_region
      %s23 = ssub.s32 32, 32
      %24 = vsyncadd [#allocation6], %s23
      %s26 = sshll.u32 [#allocation5], 4
      %s27 = int_to_ptr.vmem [resolvable:$true] %s26
      %29 = dma.hbm_to_vmem [thread:$0]  %s1, 32, %s27, [#allocation6]
    $region9: #{tpu_custom_call.1} parent=1 // pred_fallthru
      _
    // Predicated region
    $region10: #{tpu_custom_call.1} parent=1 // pred_check
      _
    $region11: #{tpu_custom_call.1} parent=1 // pred_check_branch
      %31 = sbr.rel (0) target = $region13
    $region12: #{tpu_custom_call.1} parent=1 // pred_region
      %32 = dma.done [#allocation3], 256
    $region13: #{tpu_custom_call.1} parent=1 // pred_fallthru
      _
    // Predicated region
    $region14: #{tpu_custom_call.1} parent=1 // pred_check
      _
    $region15: #{tpu_custom_call.1} parent=1 // pred_check_branch
      %34 = sbr.rel (0) target = $region17
    $region16: #{tpu_custom_call.1} parent=1 // pred_region
      %35 = dma.done [#allocation6], 32
    $region17: #{tpu_custom_call.1} parent=1 // pred_fallthru
      _
    %v36 = vld [vmem:[#allocation5] sm:$0x3]
    %v37 = vsub.f32 1.0, %v36
    %v38 = vrcp.pop %v37
    %v39 = vmul.f32 %v36, %v38
    %v40 = vlog2.pop %v39
    %v41 = vmul.f32 %v40, 0.6931472
    %v42 = vld [vmem:[#allocation2] sm:$0xff]
    %v43 = vld [vmem:[#allocation2 + $0x8] sm:$0xff]
    %v45 = vlaneseq
    %v46 = vshrl.u32 %v45, 7
    %v47 = vsub.s32 0, %v46
    %v48 = vrot.slane %v41, %v47
    %v49 = vlaneseq
    %v50 = vshrl.u32 %v49, 7
    %v51 = vsub.s32 1, %v50
    %v52 = vrot.slane %v41, %v51
    %v55 = vadd.f32 %v42, %v48
    %v56 = vadd.f32 %v43, %v52
    %57 = vst [vmem:[#allocation7] sm:$0xff] %v55
    %58 = vst [vmem:[#allocation7 + $0x8] sm:$0xff] %v56
    // Predicated region
    $region18: #{tpu_custom_call.1} parent=1 // pred_check
      _
    $region19: #{tpu_custom_call.1} parent=1 // pred_check_branch
      %60 = sbr.rel (0) target = $region21
    $region20: #{tpu_custom_call.1} parent=1 // pred_region
      %s62 = ssub.s32 256, 256
      %63 = vsyncadd [#allocation4], %s62
      %s65 = sshll.u32 [#allocation7], 4
      %s66 = int_to_ptr.vmem [resolvable:$true] %s65
      %68 = dma.vmem_to_hbm [thread:$0]  %s66, 256, %s2, [#allocation4]
    $region21: #{tpu_custom_call.1} parent=1 // pred_fallthru
      _
    // Predicated region
    $region22: #{tpu_custom_call.1} parent=1 // pred_check
      _
    $region23: #{tpu_custom_call.1} parent=1 // pred_check_branch
      %70 = sbr.rel (0) target = $region25
    $region24: #{tpu_custom_call.1} parent=1 // pred_region
      %71 = dma.done [#allocation4], 256
    $region25: #{tpu_custom_call.1} parent=1 // pred_fallthru
      _
    %72 = vsyncpa [#allocation3], 1
    %73 = vsyncpa [#allocation6], 1
    %74 = vsyncpa [#allocation4], 1

</llo_original>
